<compile_context>
chip_gen: v7x
topology: tpu7x:2x2x1
jax: 0.10.0
libtpu: 0.0.40
codegen_flags: <defaults>
</compile_context>

<pallas_src>
import functools

import jax
import jax.numpy as jnp
from jax.experimental import pallas as pl
from jax.experimental.pallas import tpu as pltpu


def _round_up(x, m):
    return (x + m - 1) // m * m


def _cdiv(a, b):
    return (a + b - 1) // b


def _chip_policy():
    """(target_block_bytes, vmem_limit_bytes, bf16_compute_ok) per TPU gen."""
    kind = ""
    try:
        kind = jax.devices()[0].device_kind.lower()
    except Exception:
        pass
    if "v7" in kind:                       # 64 MiB VMEM, 2 TCs -> stay lean
        return 2 * 1024 * 1024, 32 * 1024 * 1024, True
    if "v6" in kind:                       # 128 MiB VMEM, bf16 VPU/EUP
        return 4 * 1024 * 1024, 64 * 1024 * 1024, True
    if "v5" in kind:                       # 128 MiB VMEM, no bf16 VALU/EUP
        return 4 * 1024 * 1024, 64 * 1024 * 1024, False
    return 2 * 1024 * 1024, 32 * 1024 * 1024, False   # unknown: conservative


def _gamma_factor(q, gamma):
    """(1 - p)**gamma, specialized for integer gamma (pure VPU multiplies)."""
    g = float(gamma)
    if g == 0.0:
        return None
    if g.is_integer() and g > 0:
        factor = q
        for _ in range(int(g) - 1):
            factor = factor * q
        return factor
    return q ** g


def _finalize(log_pred, lbl, weight, gamma, ignore_index):
    """Per-position focal value from log p_target; zeros at ignored labels."""
    pt = jnp.exp(log_pred)
    factor = _gamma_factor(1.0 - pt, gamma)
    if factor is None:
        focal = (-float(weight)) * log_pred
    else:
        focal = (-float(weight)) * (factor * log_pred)
    return jnp.where(lbl != ignore_index, focal, 0.0)


# ----------------------- full-C block (fast path) ---------------------------
def _focal_kernel_single(logits_ref, labels_ref, out_ref, *, weight, gamma,
                         ignore_index, compute_dtype):
    x = logits_ref[...].astype(compute_dtype)             # (1, C, tl)
    lbl = labels_ref[...]                                  # (1, 1, tl) int32
    C = x.shape[1]
    # (1, C, 1) iota broadcasts across lanes in the compare -> no full block.
    cls = jax.lax.broadcasted_iota(jnp.int32, (1, C, 1), 1)

    m = jnp.max(x, axis=1, keepdims=True)                  # (1, 1, tl)
    xm = x - m                                             # shared: exp & select
    sum_exp = jnp.sum(jnp.exp(xm.astype(jnp.float32)), axis=1, keepdims=True)
    tgt = jnp.sum(jnp.where(cls == lbl, xm, 0.0), axis=1,
                  keepdims=True).astype(jnp.float32)       # (tgt - m)
    log_pred = tgt - jnp.log(sum_exp)                      # (1, 1, tl) f32
    out_ref[...] = _finalize(log_pred, lbl, weight, gamma,
                             ignore_index).astype(out_ref.dtype)


# ------------- C-tiled flash-style online log-softmax (vocab-scale C) -------
def _focal_kernel_ctiled(logits_ref, labels_ref, out_ref, m_sc, l_sc, t_sc, *,
                         weight, gamma, ignore_index, num_classes, tile_c,
                         mask_tail_c, compute_dtype):
    c = pl.program_id(2)

    @pl.when(c == 0)
    def _():
        m_sc[...] = jnp.full_like(m_sc, -jnp.inf)
        l_sc[...] = jnp.zeros_like(l_sc)
        t_sc[...] = jnp.zeros_like(t_sc)

    x = logits_ref[...].astype(compute_dtype)              # (1, tile_c, tl)
    lbl = labels_ref[...]                                   # (1, 1, tl)
    cls = jax.lax.broadcasted_iota(jnp.int32, (1, tile_c, 1), 1) + c * tile_c

    if mask_tail_c:
        # last C block may run past C: padded rows -> -inf (drop out of max,
        # contribute exp(-inf)=0 to the sum, never match a valid label).
        x = jnp.where(cls < num_classes, x, jnp.array(-jnp.inf, dtype=x.dtype))

    m_old = m_sc[...]
    m_new = jnp.maximum(
        m_old, jnp.max(x, axis=1, keepdims=True).astype(jnp.float32))
    alpha = jnp.exp(m_old - m_new)
    p = jnp.exp((x - m_new.astype(x.dtype)).astype(jnp.float32))
    l_sc[...] = alpha * l_sc[...] + jnp.sum(p, axis=1, keepdims=True)
    # exactly one class tile contains the target -> plain accumulation of the
    # raw selected logit works (no rescaling needed).
    t_sc[...] = t_sc[...] + jnp.sum(jnp.where(cls == lbl, x, 0.0), axis=1,
                                    keepdims=True).astype(jnp.float32)
    m_sc[...] = m_new

    @pl.when(c == pl.num_programs(2) - 1)
    def _():
        log_pred = t_sc[...] - m_sc[...] - jnp.log(l_sc[...])
        out_ref[...] = _finalize(log_pred, lbl, weight, gamma,
                                 ignore_index).astype(out_ref.dtype)


# --------------------------------- wrapper ----------------------------------
def focal_loss(logits, labels, *, weight=1.0, gamma=2.0, ignore_index=-100,
               reduction="mean", tile_l=None, tile_c=None):
    """logits: [B, C, L] float, labels: [B, L] int — matches the PyTorch module."""
    B, C, L = logits.shape
    itemsize = jnp.dtype(logits.dtype).itemsize
    ii = int(ignore_index) if ignore_index is not None else int(
        jnp.iinfo(jnp.int32).min)

    target_block_bytes, vmem_limit, bf16_ok = _chip_policy()
    compute_dtype = (jnp.bfloat16
                     if (bf16_ok and logits.dtype == jnp.bfloat16)
                     else jnp.float32)

    L128 = _round_up(L, 128)

    # ---- class-axis tiling: full-C block when it fits, else flash-style ----
    if tile_c is None:
        cols = target_block_bytes // max(1, C * itemsize)
        if cols >= 128:
            tile_c = C
        else:
            tile_c = (target_block_bytes // (512 * itemsize)) // 8 * 8
            tile_c = int(max(8, min(tile_c, _round_up(C, 8))))
    tile_c = int(tile_c)
    single_step = tile_c >= C
    if single_step:
        tile_c = C
    else:
        tile_c = max(8, (tile_c // 8) * 8)

    # ---- lane tiling: big lane-dense blocks; keep >= 4 programs in the grid
    # so both v7x TensorCores get work even when B is tiny ----
    if tile_l is None:
        denom = C if single_step else tile_c
        tile_l = (target_block_bytes // max(1, denom * itemsize)) // 128 * 128
    tile_l = int(max(128, min((int(tile_l) // 128) * 128, 16384, L128)))
    while tile_l > 128 and B * _cdiv(L, tile_l) < 4:
        tile_l = max(128, ((tile_l // 2) // 128) * 128)

    n_l = _cdiv(L, tile_l)
    labels3 = labels.reshape(B, 1, L).astype(jnp.int32)
    out_shape = jax.ShapeDtypeStruct((B, 1, L), jnp.float32)
    cost = pl.CostEstimate(
        flops=int(6 * B * C * L),
        transcendentals=int(B * L * (C + 2)),
        bytes_accessed=int(B * C * L * itemsize + 2 * B * L * 4),
    )

    if single_step:
        kernel = functools.partial(
            _focal_kernel_single, weight=float(weight), gamma=float(gamma),
            ignore_index=ii, compute_dtype=compute_dtype)
        focal_map3 = pl.pallas_call(
            kernel,
            out_shape=out_shape,
            grid_spec=pltpu.PrefetchScalarGridSpec(
                num_scalar_prefetch=0,
                grid=(B, n_l),
                in_specs=[
                    pl.BlockSpec((1, C, tile_l), lambda b, l: (b, 0, l)),
                    pl.BlockSpec((1, 1, tile_l), lambda b, l: (b, 0, l)),
                ],
                out_specs=pl.BlockSpec((1, 1, tile_l), lambda b, l: (b, 0, l)),
            ),
            compiler_params=pltpu.CompilerParams(
                dimension_semantics=("parallel", "parallel"),
                vmem_limit_bytes=vmem_limit),
            cost_estimate=cost,
        )(logits, labels3)
    else:
        n_c = _cdiv(C, tile_c)
        kernel = functools.partial(
            _focal_kernel_ctiled, weight=float(weight), gamma=float(gamma),
            ignore_index=ii, num_classes=C, tile_c=tile_c,
            mask_tail_c=(C % tile_c != 0), compute_dtype=compute_dtype)
        focal_map3 = pl.pallas_call(
            kernel,
            out_shape=out_shape,
            grid_spec=pltpu.PrefetchScalarGridSpec(
                num_scalar_prefetch=0,
                grid=(B, n_l, n_c),
                in_specs=[
                    pl.BlockSpec((1, tile_c, tile_l), lambda b, l, c: (b, c, l)),
                    pl.BlockSpec((1, 1, tile_l), lambda b, l, c: (b, 0, l)),
                ],
                out_specs=pl.BlockSpec((1, 1, tile_l),
                                       lambda b, l, c: (b, 0, l)),
                scratch_shapes=[pltpu.VMEM((1, 1, tile_l), jnp.float32)] * 3,
            ),
            compiler_params=pltpu.CompilerParams(
                dimension_semantics=("parallel", "parallel", "arbitrary"),
                vmem_limit_bytes=vmem_limit),
            cost_estimate=cost,
        )(logits, labels3)

    focal_map = focal_map3[:, 0, :]              # [B, L], zeros at ignored pos

    if reduction == "none":
        return focal_map
    s = jnp.sum(focal_map)
    if reduction == "sum":
        return s
    # 'mean' over valid positions; guard the all-ignored case instead of NaN.
    cnt = jnp.sum((labels != ii).astype(jnp.float32))
    return jnp.where(cnt > 0, s / cnt, jnp.float32(0.0))


# ------------------------------ pure-JAX reference --------------------------
def _focal_loss_ref(logits, labels, weight=1.0, gamma=2.0, ignore_index=-100,
                    reduction="mean"):
    log_preds = jax.nn.log_softmax(logits, axis=1)                  # [B,C,L]
    safe = jnp.where(labels == ignore_index, 0, labels)
    lp = jnp.take_along_axis(log_preds, safe[:, None, :], axis=1)[:, 0, :]
    p = jnp.exp(lp)
    fl = -weight * (1.0 - p) ** gamma * lp
    mask = labels != ignore_index
    fl = jnp.where(mask, fl, 0.0)
    if reduction == "mean":
        return jnp.sum(fl) / jnp.sum(mask)
    if reduction == "sum":
        return jnp.sum(fl)
    return fl


if __name__ == "__main__":
    key = jax.random.PRNGKey(0)
    # C not a multiple of 8 and L not a multiple of 128 to exercise the
    # sublane-padded reduction and the unpadded partial lane block.
    B, C, L = 2, 37, 200
    k1, k2, k3 = jax.random.split(key, 3)

    logits = jax.random.normal(k1, (B, C, L), dtype=jnp.float32)
    labels = jax.random.randint(k2, (B, L), 0, C, dtype=jnp.int32)
    drop = jax.random.bernoulli(k3, 0.2, (B, L))
    labels = jnp.where(drop, -100, labels)

    # --- full-C fast path: mean / sum / none ---
    loss_mean = jax.block_until_ready(
        focal_loss(logits, labels, weight=1.0, gamma=2.0,
                   ignore_index=-100, reduction="mean"))
    ref_mean = _focal_loss_ref(logits, labels, reduction="mean")
    assert jnp.allclose(loss_mean, ref_mean, rtol=2e-5, atol=2e-5), (
        loss_mean, ref_mean)

    loss_sum = jax.block_until_ready(
        focal_loss(logits, labels, reduction="sum"))
    ref_sum = _focal_loss_ref(logits, labels, reduction="sum")
    assert jnp.allclose(loss_sum, ref_sum, rtol=2e-5, atol=1e-4), (
        loss_sum, ref_sum)

    loss_none = jax.block_until_ready(
        focal_loss(logits, labels, reduction="none"))
    ref_none = _focal_loss_ref(logits, labels, reduction="none")
    assert jnp.allclose(loss_none, ref_none, rtol=2e-5, atol=2e-5)

    # --- flash-style C-tiled fallback (vocab-scale C), forced small here ---
    loss_ct = jax.block_until_ready(
        focal_loss(logits, labels, reduction="mean", tile_c=16))
    assert jnp.allclose(loss_ct, ref_mean, rtol=2e-5, atol=2e-5), (
        loss_ct, ref_mean)

    # --- bf16 logits (bf16 compute on v6e/v7x, f32 compute on v5e) ---
    logits_bf16 = logits.astype(jnp.bfloat16)
    loss_bf16 = jax.block_until_ready(
        focal_loss(logits_bf16, labels, reduction="mean"))
    ref_bf16 = _focal_loss_ref(logits_bf16.astype(jnp.float32), labels,
                               reduction="mean")
    assert jnp.allclose(loss_bf16, ref_bf16, rtol=5e-2, atol=5e-2), (
        loss_bf16, ref_bf16)

    print("KERNEL_OK")
</pallas_src>

<mosaic_0001>
module attributes {stable_mosaic.version = 11 : i64} {
  func.func @_focal_kernel_single(%arg0: i32, %arg1: i32, %arg2: memref<1x37x128xf32, #tpu.memory_space<vmem>>, %arg3: memref<1x1x128xi32, #tpu.memory_space<vmem>>, %arg4: memref<1x1x128xf32, #tpu.memory_space<vmem>>) attributes {dimension_semantics = [#tpu.dimension_semantics<parallel>, #tpu.dimension_semantics<parallel>], iteration_bounds = array<i64: 2, 2>, scalar_prefetch = 0 : i64, scratch_operands = 0 : i64, tpu.core_type = #tpu.core_type<tc>, window_params = [{transform_indices = @transform_0, window_bounds = array<i64: 1, 37, 128>}, {transform_indices = @transform_1, window_bounds = array<i64: 1, 1, 128>}, {transform_indices = @transform_2, window_bounds = array<i64: 1, 1, 128>}]} {
    %c0 = arith.constant 0 : index
    %c0_0 = arith.constant 0 : index
    %c0_1 = arith.constant 0 : index
    %0 = vector.load %arg2[%c0, %c0_0, %c0_1] : memref<1x37x128xf32, #tpu.memory_space<vmem>>, vector<1x37x128xf32>
    %c0_2 = arith.constant 0 : index
    %c0_3 = arith.constant 0 : index
    %c0_4 = arith.constant 0 : index
    %1 = vector.load %arg3[%c0_2, %c0_3, %c0_4] : memref<1x1x128xi32, #tpu.memory_space<vmem>>, vector<1x1x128xi32>
    %2 = tpu.iota {dimensions = array<i32: 1>} : vector<1x37x1xi32>
    %cst = arith.constant dense<0xFF800000> : vector<1x128xf32>
    %3 = vector.multi_reduction <maximumf>, %0, %cst [1] : vector<1x37x128xf32> to vector<1x128xf32>
    %4 = vector.shape_cast %3 : vector<1x128xf32> to vector<1x1x128xf32>
    %5 = vector.broadcast %4 : vector<1x1x128xf32> to vector<1x37x128xf32>
    %6 = arith.subf %0, %5 : vector<1x37x128xf32>
    %7 = math.exp %6 : vector<1x37x128xf32>
    %cst_5 = arith.constant dense<0.000000e+00> : vector<1x128xf32>
    %8 = vector.multi_reduction <add>, %7, %cst_5 [1] : vector<1x37x128xf32> to vector<1x128xf32>
    %9 = vector.shape_cast %8 : vector<1x128xf32> to vector<1x1x128xf32>
    %10 = vector.broadcast %2 : vector<1x37x1xi32> to vector<1x37x128xi32>
    %11 = vector.broadcast %1 : vector<1x1x128xi32> to vector<1x37x128xi32>
    %12 = arith.cmpi eq, %10, %11 : vector<1x37x128xi32>
    %cst_6 = arith.constant 0.000000e+00 : f32
    %13 = vector.broadcast %cst_6 : f32 to vector<1x37x128xf32>
    %14 = arith.select %12, %6, %13 : vector<1x37x128xi1>, vector<1x37x128xf32>
    %cst_7 = arith.constant dense<0.000000e+00> : vector<1x128xf32>
    %15 = vector.multi_reduction <add>, %14, %cst_7 [1] : vector<1x37x128xf32> to vector<1x128xf32>
    %16 = vector.shape_cast %15 : vector<1x128xf32> to vector<1x1x128xf32>
    %17 = math.log %9 : vector<1x1x128xf32>
    %18 = arith.subf %16, %17 : vector<1x1x128xf32>
    %19 = math.exp %18 : vector<1x1x128xf32>
    %cst_8 = arith.constant 1.000000e+00 : f32
    %20 = vector.broadcast %cst_8 : f32 to vector<1x1x128xf32>
    %21 = arith.subf %20, %19 : vector<1x1x128xf32>
    %22 = arith.mulf %21, %21 : vector<1x1x128xf32>
    %23 = arith.mulf %22, %18 : vector<1x1x128xf32>
    %cst_9 = arith.constant -1.000000e+00 : f32
    %24 = vector.broadcast %cst_9 : f32 to vector<1x1x128xf32>
    %25 = arith.mulf %24, %23 : vector<1x1x128xf32>
    %c-100_i32 = arith.constant -100 : i32
    %26 = vector.broadcast %c-100_i32 : i32 to vector<1x1x128xi32>
    %27 = arith.cmpi ne, %1, %26 : vector<1x1x128xi32>
    %cst_10 = arith.constant 0.000000e+00 : f32
    %28 = vector.broadcast %cst_10 : f32 to vector<1x1x128xf32>
    %29 = arith.select %27, %25, %28 : vector<1x1x128xi1>, vector<1x1x128xf32>
    %c0_11 = arith.constant 0 : index
    %c0_12 = arith.constant 0 : index
    %c0_13 = arith.constant 0 : index
    %30 = vector.load %arg4[%c0_11, %c0_12, %c0_13] : memref<1x1x128xf32, #tpu.memory_space<vmem>>, vector<1x1x128xf32>
    tpu.vector_store %arg4[%c0_11, %c0_12, %c0_13], %29 {strides = array<i32>} : memref<1x1x128xf32, #tpu.memory_space<vmem>>, vector<1x1x128xf32>,
    return
  }
  func.func @transform_0(%arg0: i32, %arg1: i32) -> (i32, i32, i32) {
    %c0_i32 = arith.constant 0 : i32
    %c0_i32_0 = arith.constant 0 : i32
    return %arg0, %c0_i32, %arg1 : i32, i32, i32
  }
  func.func @transform_1(%arg0: i32, %arg1: i32) -> (i32, i32, i32) {
    %c0_i32 = arith.constant 0 : i32
    %c0_i32_0 = arith.constant 0 : i32
    return %arg0, %c0_i32, %arg1 : i32, i32, i32
  }
  func.func @transform_2(%arg0: i32, %arg1: i32) -> (i32, i32, i32) {
    %c0_i32 = arith.constant 0 : i32
    %c0_i32_0 = arith.constant 0 : i32
    return %arg0, %c0_i32, %arg1 : i32, i32, i32
  }
}

</mosaic_0001>

<llo_original>
// kernel: tpu_custom_call.1
$region0: #{tpu_custom_call.1}
  #allocation0 [shape = 'u32[]', space=smem, size = 0x4, offset = 0x4, fixed_abs, tag = 'smem constant byte address 0x4 - core index']
  #allocation1 [shape = 'u32[144,128]{1,0:T(1,128)}', space=vmem, size = 0x12000, scoped, tag = 'internal scratch']
  %s0 = inlined_call_operand.vmem [shape: f32[2,37,200], index: 0, kind: input, shape index: {}]
  %s1 = inlined_call_operand.vmem [shape: s32[2,1,200], index: 1, kind: input, shape index: {}]
  %s2 = inlined_call_operand.hbm [shape: f32[2,1,200], index: 2, kind: output, shape index: {}]
  %s3 = sld [smem:[#allocation0]]
  $region79: #{tpu_custom_call.1} parent=0
    _
  %s5 = ssub.s32 1, %s3
  %s6 = scalar_select 0, %s5, %s3
  $region1: #{tpu_custom_call.1} parent=0
    #allocation2 [shape = 'u8[40960]{0}', space=vmem, size = 0xa000, scoped, tag = 'input window, operand 0']
    #allocation3 [shape = 'u8[1024]{0}', space=vmem, size = 0x400, scoped, tag = 'output window, operand 0']
    #allocation4 [shape = 's32[2]{0}', space=sflag, size = 0x8, scoped, tag = 'scoped memory for tpu_custom_call.1']
    %7 = vsyncpa [#allocation4], 0
    %s8 = scalar_lea.sflag [#allocation4], 1
    %9 = vsyncpa %s8, 0
    loop: start=0, step=1, limit=6
    $region2: #{tpu_custom_call.1} parent=1 // loop_pre_header
      _
    $region3: #{tpu_custom_call.1} parent=1 // loop_header
      %s11 = sphi 0, %s15
      %p12 = scmp.ge.s32.totalorder %s11, 6
      %s18 = sphi 0, %s30
      %s19 = sphi 0, %s26
      %s20 = sphi 0, %s18
      %s21 = sphi 0, %s19
      %s22 = sphi 0, %s20
      %s23 = sphi 0, %s21
      %s35 = sphi 0, %s37
      %s38 = sphi 0, %s35
      %s39 = sphi 0, %s38
      %s55 = sphi 0, %s39
      %s63 = sphi 0, %s65
      %s66 = sphi 0, %s63
      %s67 = sphi 0, %s66
      %s83 = sphi 0, %s67
      %s91 = sphi 0, %s93
      %s94 = sphi 0, %s91
      %s95 = sphi 0, %s94
      %s111 = sphi 0, %s95
    $region4: #{tpu_custom_call.1} parent=1 // loop_header_branch
      %14 = sbr.rel (%p12) target = $region8
    $region5: #{tpu_custom_call.1} parent=1 // loop_body
      %s16 = ssub.s32 %s11, 1
      %s17 = ssub.s32 %s11, 2
      %s24 = sadd.s32 1, %s19
      %p25 = scmp.ge.s32.totalorder %s24, 2
      %s26 = scalar_select %p25, 0, %s24
      %s27 = sadd.s32 1, %s18
      %s28 = scalar_select %p25, %s27, %s18
      %p29 = scmp.ge.s32.totalorder %s28, 2
      %s30 = scalar_select %p29, 0, %s28
      %s31 = ssub.s32 %s18, %s30
      %s32 = ssub.s32 %s19, %s26
      %s33 = sor.u32 %s31, %s32
      %p34 = scmp.eq.s32.totalorder %s33, 0
      %s36 = sadd.s32 %s35, 1
      %s37 = scalar_select %p34, %s35, %s36
      %p40 = pneg %p34
      %p41 = scmp.eq.s32.totalorder %s11, 3
      %p42 = por %p40, %p41
      %p43 = scmp.ne.s32.totalorder %s35, %s38
      %p44 = scmp.eq.s32.totalorder %s11, 0
      %p45 = por %p43, %p44
      %p46 = scmp.ne.s32.totalorder %s35, %s38
      %p47 = scmp.eq.s32.totalorder %s16, 3
      %p48 = por %p46, %p47
      %p49 = scmp.ne.s32.totalorder %s38, %s39
      %p50 = scmp.eq.s32.totalorder %s16, 0
      %p51 = por %p49, %p50
      %p52 = scmp.ne.s32.totalorder %s38, %s39
      %p53 = scmp.eq.s32.totalorder %s17, 3
      %p54 = por %p52, %p53
      %p56 = scmp.ne.s32.totalorder %s39, %s55
      %p57 = scmp.eq.s32.totalorder %s17, 0
      %p58 = por %p56, %p57
      %s59 = ssub.s32 %s18, %s30
      %s60 = ssub.s32 %s19, %s26
      %s61 = sor.u32 %s59, %s60
      %p62 = scmp.eq.s32.totalorder %s61, 0
      %s64 = sadd.s32 %s63, 1
      %s65 = scalar_select %p62, %s63, %s64
      %p68 = pneg %p62
      %p69 = scmp.eq.s32.totalorder %s11, 3
      %p70 = por %p68, %p69
      %p71 = scmp.ne.s32.totalorder %s63, %s66
      %p72 = scmp.eq.s32.totalorder %s11, 0
      %p73 = por %p71, %p72
      %p74 = scmp.ne.s32.totalorder %s63, %s66
      %p75 = scmp.eq.s32.totalorder %s16, 3
      %p76 = por %p74, %p75
      %p77 = scmp.ne.s32.totalorder %s66, %s67
      %p78 = scmp.eq.s32.totalorder %s16, 0
      %p79 = por %p77, %p78
      %p80 = scmp.ne.s32.totalorder %s66, %s67
      %p81 = scmp.eq.s32.totalorder %s17, 3
      %p82 = por %p80, %p81
      %p84 = scmp.ne.s32.totalorder %s67, %s83
      %p85 = scmp.eq.s32.totalorder %s17, 0
      %p86 = por %p84, %p85
      %s87 = ssub.s32 %s18, %s30
      %s88 = ssub.s32 %s19, %s26
      %s89 = sor.u32 %s87, %s88
      %p90 = scmp.eq.s32.totalorder %s89, 0
      %s92 = sadd.s32 %s91, 1
      %s93 = scalar_select %p90, %s91, %s92
      %p96 = pneg %p90
      %p97 = scmp.eq.s32.totalorder %s11, 3
      %p98 = por %p96, %p97
      %p99 = scmp.ne.s32.totalorder %s91, %s94
      %p100 = scmp.eq.s32.totalorder %s11, 0
      %p101 = por %p99, %p100
      %p102 = scmp.ne.s32.totalorder %s91, %s94
      %p103 = scmp.eq.s32.totalorder %s16, 3
      %p104 = por %p102, %p103
      %p105 = scmp.ne.s32.totalorder %s94, %s95
      %p106 = scmp.eq.s32.totalorder %s16, 0
      %p107 = por %p105, %p106
      %p108 = scmp.ne.s32.totalorder %s94, %s95
      %p109 = scmp.eq.s32.totalorder %s17, 3
      %p110 = por %p108, %p109
      %p112 = scmp.ne.s32.totalorder %s95, %s111
      %p113 = scmp.eq.s32.totalorder %s17, 0
      %p114 = por %p112, %p113
      %p115 = scmp.le.s32.totalorder 1, %s11
      %p116 = scmp.lt.s32.totalorder %s11, 5
      %p117 = pnand %p115, %p116
      %p118 = pneg %p117
      // Predicated region
      $region9: #{tpu_custom_call.1} parent=5 // pred_check
        _
      $region10: #{tpu_custom_call.1} parent=5 // pred_check_branch
        %120 = sbr.rel (%p117) target = $region12
      $region11: #{tpu_custom_call.1} parent=5 // pred_region
        %s121 = ssub.s32 %s11, 1
      $region12: #{tpu_custom_call.1} parent=5 // pred_fallthru
        _
      %p122 = scmp.lt.s32.totalorder %s11, 4
      // Predicated region
      $region13: #{tpu_custom_call.1} parent=5 // pred_check
        %p123 = pneg %p122
      $region14: #{tpu_custom_call.1} parent=5 // pred_check_branch
        %125 = sbr.rel (%p123) target = $region16
      $region15: #{tpu_custom_call.1} parent=5 // pred_region
        // Predicated region
        $region17: #{tpu_custom_call.1} parent=15 // pred_check
          %p126 = pneg %p45
        $region18: #{tpu_custom_call.1} parent=15 // pred_check_branch
          %128 = sbr.rel (%p126) target = $region20
        $region19: #{tpu_custom_call.1} parent=15 // pred_region
          %s129 = sand.u32 %s35, 1
          %s130 = sand.u32 %s35, 1
          %s131 = smul.addr %s130, 40
          %s132 = scalar_lea.vmem [#allocation2], %s131
          %s133 = smul.addr %s18, 10
          %s134 = sadd.s32 %s19, %s133
          %s135 = smul.addr %s134, 8
          %s136 = scalar_lea.vmem %s0, %s135
          // Predicated region
          $region21: #{tpu_custom_call.1} parent=19 // pred_check
            _
          $region22: #{tpu_custom_call.1} parent=19 // pred_check_branch
            %138 = sbr.rel (0) target = $region24
          $region23: #{tpu_custom_call.1} parent=19 // pred_region
            // Predicated region
            $region25: #{tpu_custom_call.1} parent=23 // pred_check
              _
            $region26: #{tpu_custom_call.1} parent=23 // pred_check_branch
              %140 = sbr.rel (0) target = $region28
            $region27: #{tpu_custom_call.1} parent=23 // pred_region
              // Predicated region
              $region40: #{tpu_custom_call.1} parent=27 // pred_check
                _
              $region41: #{tpu_custom_call.1} parent=27 // pred_check_branch
                %163 = sbr.rel (0) target = $region43
              $region42: #{tpu_custom_call.1} parent=27 // pred_region
                loop: start=0, step=1, limit=1
                $region44: #{tpu_custom_call.1} parent=42 // loop_pre_header
                  _
                $region45: #{tpu_custom_call.1} parent=42 // loop_header
                  %s165 = sphi 0, %s169
                  %p166 = scmp.ge.s32.totalorder %s165, 1
                  %s170 = sphi %s136, %s136
                  %s171 = sphi %s132, %s132
                $region46: #{tpu_custom_call.1} parent=42 // loop_header_branch
                  %168 = sbr.rel (%p166) target = $region50
                $region47: #{tpu_custom_call.1} parent=42 // loop_body
                  %v172 = vld [vmem:[%s170] sm:$0xff]
                  %173 = vst [vmem:[%s171] sm:$0xff] %v172
                  %v174 = vld [vmem:[%s170 + $0x10] sm:$0xff]
                  %175 = vst [vmem:[%s171 + $0x8] sm:$0xff] %v174
                  %v176 = vld [vmem:[%s170 + $0x20] sm:$0xff]
                  %177 = vst [vmem:[%s171 + $0x10] sm:$0xff] %v176
                  %v178 = vld [vmem:[%s170 + $0x30] sm:$0xff]
                  %179 = vst [vmem:[%s171 + $0x18] sm:$0xff] %v178
                  %v180 = vld [vmem:[%s170 + $0x40] sm:$0xff]
                  %181 = vst [vmem:[%s171 + $0x20] sm:$0xff] %v180
                $region48: #{tpu_custom_call.1} parent=42 // loop_footer
                  %s169 = sadd.s32 1, %s165
                $region49: #{tpu_custom_call.1} parent=42 // loop_footer_branch
                  %164 = sbr.rel target = $region45
                $region50: #{tpu_custom_call.1} parent=42 // loop_exit
                  _
              $region43: #{tpu_custom_call.1} parent=27 // pred_fallthru
                _
              // Predicated region
              $region51: #{tpu_custom_call.1} parent=27 // pred_check
                _
              $region52: #{tpu_custom_call.1} parent=27 // pred_check_branch
                %183 = sbr.rel target = $region54
              $region53: #{tpu_custom_call.1} parent=27 // pred_region
                _
              $region54: #{tpu_custom_call.1} parent=27 // pred_fallthru
                _
            $region28: #{tpu_custom_call.1} parent=23 // pred_fallthru
              _
            // Predicated region
            $region29: #{tpu_custom_call.1} parent=23 // pred_check
              _
            $region30: #{tpu_custom_call.1} parent=23 // pred_check_branch
              %142 = sbr.rel target = $region32
            $region31: #{tpu_custom_call.1} parent=23 // pred_region
              loop: start=0, step=1, limit=1
              $region33: #{tpu_custom_call.1} parent=31 // loop_pre_header
                _
              $region34: #{tpu_custom_call.1} parent=31 // loop_header
                %s145 = sphi 0, %s149
                %p146 = scmp.ge.s32.totalorder %s145, 1
                %s150 = sphi %s136, %s136
                %s151 = sphi %s132, %s132
              $region35: #{tpu_custom_call.1} parent=31 // loop_header_branch
                %148 = sbr.rel (%p146) target = $region39
              $region36: #{tpu_custom_call.1} parent=31 // loop_body
                %v152 = vld [vmem:[%s150] sm:$0xff]
                %153 = vst [vmem:[%s151] sm:$0xff] %v152
                %v154 = vld [vmem:[%s150 + $0x10] sm:$0xff]
                %155 = vst [vmem:[%s151 + $0x8] sm:$0xff] %v154
                %v156 = vld [vmem:[%s150 + $0x20] sm:$0xff]
                %157 = vst [vmem:[%s151 + $0x10] sm:$0xff] %v156
                %v158 = vld [vmem:[%s150 + $0x30] sm:$0xff]
                %159 = vst [vmem:[%s151 + $0x18] sm:$0xff] %v158
                %v160 = vld [vmem:[%s150 + $0x40] sm:$0xff]
                %161 = vst [vmem:[%s151 + $0x20] sm:$0xff] %v160
              $region37: #{tpu_custom_call.1} parent=31 // loop_footer
                %s149 = sadd.s32 1, %s145
              $region38: #{tpu_custom_call.1} parent=31 // loop_footer_branch
                %144 = sbr.rel target = $region34
              $region39: #{tpu_custom_call.1} parent=31 // loop_exit
                _
            $region32: #{tpu_custom_call.1} parent=23 // pred_fallthru
              _
          $region24: #{tpu_custom_call.1} parent=19 // pred_fallthru
            _
          %184 = vnop
        $region20: #{tpu_custom_call.1} parent=15 // pred_fallthru
          _
        // Predicated region
        $region55: #{tpu_custom_call.1} parent=15 // pred_check
          %p185 = pneg %p73
        $region56: #{tpu_custom_call.1} parent=15 // pred_check_branch
          %187 = sbr.rel (%p185) target = $region58
        $region57: #{tpu_custom_call.1} parent=15 // pred_region
          %p188 = scmp.lt.s32.totalorder %s18, 1
          %s189 = scalar_select %p188, %s18, 1
          %p190 = scmp.lt.s32.totalorder %s19, 1
          %s191 = scalar_select %p190, %s19, 1
          %s192 = smul.addr %s189, 2
          %s193 = sadd.s32 %s191, %s192
          %s194 = scalar_lea.vmem %s1, %s193
        $region58: #{tpu_custom_call.1} parent=15 // pred_fallthru
          _
      $region16: #{tpu_custom_call.1} parent=5 // pred_fallthru
        _
      %p195 = scmp.le.s32.totalorder 1, %s11
      %p196 = scmp.lt.s32.totalorder %s11, 5
      %p197 = pnand %p195, %p196
      %p198 = pneg %p197
      // Predicated region
      $region59: #{tpu_custom_call.1} parent=5 // pred_check
        _
      $region60: #{tpu_custom_call.1} parent=5 // pred_check_branch
        %200 = sbr.rel (%p197) target = $region62
      $region61: #{tpu_custom_call.1} parent=5 // pred_region
        %s201 = ssub.s32 %s11, 1
        %s202 = sand.u32 %s38, 1
        %s203 = sand.u32 %s38, 1
        %s204 = smul.addr %s203, 40
        %s205 = scalar_lea.vmem [#allocation2], %s204
        // Predicated region
        $region63: #{tpu_custom_call.1} parent=61 // pred_check
          %p206 = pneg %p51
        $region64: #{tpu_custom_call.1} parent=61 // pred_check_branch
          %208 = sbr.rel (%p206) target = $region66
        $region65: #{tpu_custom_call.1} parent=61 // pred_region
          _
        $region66: #{tpu_custom_call.1} parent=61 // pred_fallthru
          _
        %s209 = sand.u32 %s38, 1
        %s210 = sand.u32 %s38, 1
        %s211 = smul.addr %s210, 40
        %s212 = scalar_lea.vmem [#allocation2], %s211
        %p213 = pneg %p51
        %p214 = pneg %p48
        %p215 = scmp.lt.s32.totalorder %s20, 1
        %s216 = scalar_select %p215, %s20, 1
        %p217 = scmp.lt.s32.totalorder %s21, 1
        %s218 = scalar_select %p217, %s21, 1
        %s219 = smul.addr %s216, 2
        %s220 = sadd.s32 %s218, %s219
        %s221 = scalar_lea.vmem %s1, %s220
        %p222 = pneg %p79
        %p223 = pneg %p76
        %p224 = pneg %p107
        %p225 = pneg %p104
        %s226 = sand.u32 %s94, 1
        %s227 = scalar_lea.sflag [#allocation4], %s226
        %s228 = sand.u32 %s94, 1
        %s229 = scalar_lea.vmem [#allocation3], %s228
        %p230 = scmp.lt.s32.totalorder %s20, 1
        %s231 = scalar_select %p230, %s20, 1
        %p232 = scmp.lt.s32.totalorder %s21, 1
        %s233 = scalar_select %p232, %s21, 1
        %s234 = smul.addr %s231, 2
        %s235 = sadd.s32 %s233, %s234
        %s236 = scalar_lea.vmem %s1, %s235
        %v237 = vld [vmem:[%s205] sm:$0xff]
        %v238 = vld [vmem:[%s205 + $0x8] sm:$0xff]
        %v239 = vld [vmem:[%s205 + $0x10] sm:$0xff]
        %v240 = vld [vmem:[%s205 + $0x18] sm:$0xff]
        %v241 = vld [vmem:[%s205 + $0x20] sm:$0x1f]
        %v242 = vld [vmem:[%s236] sm:$0x1]
        %v243 = vlaneseq
        %v244 = vshrl.u32 %v243, 7
        %v245 = vadd.s32 %v244, 8
        %v246 = vadd.s32 %v244, 16
        %v247 = vadd.s32 %v244, 24
        %v248 = vadd.s32 %v244, 32
        %vm249 = vcmask 1044480
        %v250 = vsel %vm249, %v241, -inf
        %v251 = vmax.f32 %v237, %v250
        %v252 = vmax.f32 %v251, %v238
        %v253 = vmax.f32 %v239, %v240
        %v254 = vmax.f32 %v252, %v253
        %v255 = vrot.slane %v254, 4
        %v256 = vmax.f32 %v254, %v255
        %v257 = vrot.slane %v256, 2
        %v258 = vmax.f32 %v256, %v257
        %v259 = vrot.slane %v258, 1
        %v260 = vmax.f32 %v258, %v259
        %v261 = vsub.f32 %v237, %v260
        %v262 = vsub.f32 %v238, %v260
        %v263 = vsub.f32 %v239, %v260
        %v264 = vsub.f32 %v240, %v260
        %v265 = vsub.f32 %v241, %v260
        %v266 = vmul.f32 %v261, 1.442695
        %v267 = vpow.pop %v266
        %v268 = vmul.f32 %v262, 1.442695
        %v269 = vpow.pop %v268
        %v270 = vmul.f32 %v263, 1.442695
        %v271 = vpow.pop %v270
        %v272 = vmul.f32 %v264, 1.442695
        %v273 = vpow.pop %v272
        %v274 = vmul.f32 %v265, 1.442695
        %v275 = vpow.pop %v274
        %v276 = vadd.f32 %v267, %v269
        %v277 = vadd.f32 %v276, %v271
        %v278 = vadd.f32 %v277, %v273
        %v279 = vsel %vm249, %v275, 0.0
        %v280 = vadd.f32 %v278, %v279
        %v281 = vrot.slane %v280, 4
        %v282 = vadd.f32 %v280, %v281
        %v283 = vrot.slane %v282, 2
        %v284 = vadd.f32 %v282, %v283
        %v285 = vrot.slane %v284, 1
        %v286 = vadd.f32 %v284, %v285
        %v287 = vlaneseq
        %v288 = vshrl.u32 %v287, 7
        %v289 = vsub.s32 0, %v288
        %v290 = vrot.slane %v242, %v289
        %vm291 = vcmp.eq.s32.totalorder %v244, %v290
        %vm292 = vcmp.eq.s32.totalorder %v245, %v290
        %vm293 = vcmp.eq.s32.totalorder %v246, %v290
        %vm294 = vcmp.eq.s32.totalorder %v247, %v290
        %vm295 = vcmp.eq.s32.totalorder %v248, %v290
        %v296 = vsel %vm291, %v261, 0.0
        %v297 = vsel %vm292, %v262, 0.0
        %v298 = vsel %vm293, %v263, 0.0
        %v299 = vsel %vm294, %v264, 0.0
        %v300 = vsel %vm295, %v265, 0.0
        %v301 = vadd.f32 %v296, %v297
        %v302 = vadd.f32 %v301, %v298
        %v303 = vadd.f32 %v302, %v299
        %v304 = vsel %vm249, %v300, 0.0
        %v305 = vadd.f32 %v303, %v304
        %v306 = vrot.slane %v305, 4
        %v307 = vadd.f32 %v305, %v306
        %v308 = vrot.slane %v307, 2
        %v309 = vadd.f32 %v307, %v308
        %v310 = vrot.slane %v309, 1
        %v311 = vadd.f32 %v309, %v310
        %v312 = vlog2.pop %v286
        %v313 = vmul.f32 %v312, 0.6931472
        %v314 = vsub.f32 %v311, %v313
        %v315 = vmul.f32 %v314, 1.442695
        %v316 = vpow.pop %v315
        %v317 = vsub.f32 1.0, %v316
        %v318 = vmul.f32 %v317, %v317
        %v319 = vmul.f32 %v318, %v314
        %v320 = vmul.f32 %v319, -1.0
        %vm321 = vcmp.ne.s32.totalorder %v242, 4294967196
        %v322 = vsel %vm321, %v320, 0.0
        %323 = vst [vmem:[%s229] sm:$0x1] %v322
        %s324 = sand.u32 %s94, 1
        %s325 = scalar_lea.sflag [#allocation4], %s324
        %s326 = sand.u32 %s94, 1
        %s327 = scalar_lea.vmem [#allocation3], %s326
        // Predicated region
        $region67: #{tpu_custom_call.1} parent=61 // pred_check
          %p328 = pneg %p104
        $region68: #{tpu_custom_call.1} parent=61 // pred_check_branch
          %330 = sbr.rel (%p328) target = $region70
        $region69: #{tpu_custom_call.1} parent=61 // pred_region
          %s332 = ssub.s32 16, 16
          %333 = vsyncadd %s325, %s332
          %s334 = smul.addr %s20, 2
          %s335 = sadd.s32 %s21, %s334
          %s336 = smul.addr %s335, 16
          %s337 = scalar_lea.hbm %s2, %s336
          %s339 = sshll.u32 %s327, 4
          %s340 = int_to_ptr.vmem [resolvable:$true] %s339
          %342 = dma.vmem_to_hbm [thread:$0]  %s340, 16, %s337, %s325
        $region70: #{tpu_custom_call.1} parent=61 // pred_fallthru
          _
      $region62: #{tpu_custom_call.1} parent=5 // pred_fallthru
        _
      %p343 = scmp.le.s32.totalorder 2, %s11
      // Predicated region
      $region71: #{tpu_custom_call.1} parent=5 // pred_check
        %p344 = pneg %p343
      $region72: #{tpu_custom_call.1} parent=5 // pred_check_branch
        %346 = sbr.rel (%p344) target = $region74
      $region73: #{tpu_custom_call.1} parent=5 // pred_region
        %s347 = ssub.s32 %s11, 2
        // Predicated region
        $region75: #{tpu_custom_call.1} parent=73 // pred_check
          %p348 = pneg %p110
        $region76: #{tpu_custom_call.1} parent=73 // pred_check_branch
          %350 = sbr.rel (%p348) target = $region78
        $region77: #{tpu_custom_call.1} parent=73 // pred_region
          %s351 = sand.u32 %s95, 1
          %s352 = scalar_lea.sflag [#allocation4], %s351
          %s353 = sand.u32 %s95, 1
          %s354 = scalar_lea.vmem [#allocation3], %s353
          %355 = dma.done %s352, 16
        $region78: #{tpu_custom_call.1} parent=73 // pred_fallthru
          _
      $region74: #{tpu_custom_call.1} parent=5 // pred_fallthru
        _
    $region6: #{tpu_custom_call.1} parent=1 // loop_footer
      %s15 = sadd.s32 1, %s11
    $region7: #{tpu_custom_call.1} parent=1 // loop_footer_branch
      %10 = sbr.rel target = $region3
    $region8: #{tpu_custom_call.1} parent=1 // loop_exit
      _
    %356 = vsyncpa [#allocation4], 1
    %s357 = scalar_lea.sflag [#allocation4], 1
    %358 = vsyncpa %s357, 1

</llo_original>
